<compile_context>
chip_gen: v6e
topology: v6e:2x2x1
jax: 0.10.0
libtpu: 0.0.40
codegen_flags: <defaults>
</compile_context>

<pallas_src>
import functools

import jax
import jax.numpy as jnp
from jax.experimental import pallas as pl
from jax.experimental.pallas import tpu as pltpu

EPS_PPO = 1e-05
_LANES = 128


def _pad_rows(n):
    return ((n + _LANES - 1) // _LANES) * _LANES


# ----------------------------------------------------------------------------
# Kernel 1: advantages = returns[:-1] - value_preds[:-1], optionally normalized
#           (adv - adv.mean()) / (adv.std() + EPS_PPO)   [torch std is unbiased]
#
# Inputs arrive sublane-packed as (rows, 128); the first n_valid = T*N flat
# elements are live (the remaining elements are the final rollout timestep
# plus zero padding) and are masked out of the statistics only.  The output
# stays full-width lane-dense; the wrapper crops to n_valid.
# ----------------------------------------------------------------------------
def _advantage_kernel(returns_ref, value_preds_ref, adv_ref, *, n_valid, normalize):
    diff = returns_ref[...] - value_preds_ref[...]          # (rows, 128)
    if normalize:
        lanes = diff.shape[-1]
        row = jax.lax.broadcasted_iota(jnp.int32, diff.shape, 0)
        lane = jax.lax.broadcasted_iota(jnp.int32, diff.shape, 1)
        mask = (row * lanes + lane) < n_valid
        diff_m = jnp.where(mask, diff, 0.0)
        # Single pass: sum and sum-of-squares, then mean / unbiased var.
        s = jnp.sum(diff_m)
        sq = jnp.sum(diff_m * diff_m)
        mean = s / n_valid
        var = (sq - s * s / n_valid) / max(n_valid - 1, 1)
        # One scalar reciprocal instead of a full vector divide.
        inv = 1.0 / (jnp.sqrt(var) + EPS_PPO)
        out = (diff - mean) * inv
    else:
        out = diff
    # Full-width unmasked store; wrapper crops the tail (incl. last timestep).
    adv_ref[...] = out


def get_advantages(returns, value_preds, use_normalized_advantage=True):
    # returns, value_preds: [T+1, N] float32 (rollouts.returns / value_preds).
    tp1, n_envs = returns.shape
    t = tp1 - 1
    n_valid = t * n_envs
    total = tp1 * n_envs
    total_pad = _pad_rows(total)
    rows = total_pad // _LANES

    def pack(x):
        flat = jnp.reshape(x.astype(jnp.float32), (-1,))
        if total_pad != total:
            flat = jnp.pad(flat, (0, total_pad - total))
        return jnp.reshape(flat, (rows, _LANES))

    kernel = functools.partial(
        _advantage_kernel, n_valid=n_valid, normalize=use_normalized_advantage
    )
    vmem = pl.BlockSpec(memory_space=pltpu.MemorySpace.VMEM)
    cost = pl.CostEstimate(
        flops=8 * total_pad,
        transcendentals=1,                       # sqrt
        bytes_accessed=3 * total_pad * 4,
    )
    adv_padded = pl.pallas_call(
        kernel,
        in_specs=[vmem, vmem],
        out_specs=vmem,
        out_shape=jax.ShapeDtypeStruct((rows, _LANES), jnp.float32),
        cost_estimate=cost,
    )(pack(returns), pack(value_preds))

    adv_flat = jnp.reshape(adv_padded, (-1,))[:n_valid]
    return jnp.reshape(adv_flat, (t, n_envs))


# ----------------------------------------------------------------------------
# Kernel 2: PPO clipped-surrogate action loss, clipped value loss, total loss.
#
# The six minibatch tensors arrive stacked and zero-padded as (6, rows, 128):
#   [values, action_log_probs, old_action_log_probs,
#    value_preds_batch, return_batch, adv_targ]
# Zero padding is self-masking (exp(0)*0 = 0 and (0-0)^2 = 0), so no in-kernel
# validity mask is needed; sums are divided by the true element count.
# Results are packed into one (1, 128) lane vector:
#   lane 0 = action_loss, lane 1 = value_loss, lane 2 = total_loss.
# ----------------------------------------------------------------------------
def _ppo_loss_kernel(stacked_ref, entropy_ref, out_ref, *,
                     n_valid, clip_param, value_loss_coef, entropy_coef,
                     use_clipped_value_loss):
    values = stacked_ref[0]                       # (rows, 128)
    logp = stacked_ref[1]
    old_logp = stacked_ref[2]
    value_preds = stacked_ref[3]
    returns = stacked_ref[4]
    adv = stacked_ref[5]

    inv_n = 1.0 / n_valid

    # Action loss (clipped surrogate).  Padded lanes contribute exp(0)*0 = 0.
    ratio = jnp.exp(logp - old_logp)
    surr1 = ratio * adv
    surr2 = jnp.clip(ratio, 1.0 - clip_param, 1.0 + clip_param) * adv
    action_loss = -(jnp.sum(jnp.minimum(surr1, surr2)) * inv_n)

    # Value loss.  Padded lanes contribute (0-0)^2 = 0 in both branches.
    if use_clipped_value_loss:
        value_pred_clipped = value_preds + jnp.clip(
            values - value_preds, -clip_param, clip_param)
        value_losses = (values - returns) ** 2
        value_losses_clipped = (value_pred_clipped - returns) ** 2
        value_loss = 0.5 * (
            jnp.sum(jnp.maximum(value_losses, value_losses_clipped)) * inv_n)
    else:
        value_loss = 0.5 * (jnp.sum((returns - values) ** 2) * inv_n)

    entropy = entropy_ref[0]                      # scalar from SMEM
    total_loss = (value_loss * value_loss_coef
                  + action_loss
                  - entropy * entropy_coef)

    out_lane = jax.lax.broadcasted_iota(jnp.int32, out_ref.shape, 1)
    out_ref[...] = (jnp.where(out_lane == 0, action_loss, 0.0)
                    + jnp.where(out_lane == 1, value_loss, 0.0)
                    + jnp.where(out_lane == 2, total_loss, 0.0))


def ppo_losses(values, action_log_probs, old_action_log_probs,
               value_preds_batch, return_batch, adv_targ, dist_entropy, *,
               clip_param, value_loss_coef, entropy_coef,
               use_clipped_value_loss=True):
    b = int(values.shape[0])
    b_pad = _pad_rows(b)
    rows = b_pad // _LANES

    # One stack + one zero-pad + one reshape -> single (6, rows, 128) input.
    stacked = jnp.stack(
        [jnp.reshape(x.astype(jnp.float32), (-1,))
         for x in (values, action_log_probs, old_action_log_probs,
                   value_preds_batch, return_batch, adv_targ)],
        axis=0)                                   # (6, B)
    if b_pad != b:
        stacked = jnp.pad(stacked, ((0, 0), (0, b_pad - b)))  # MUST be zero-pad
    stacked = jnp.reshape(stacked, (6, rows, _LANES))

    kernel = functools.partial(
        _ppo_loss_kernel,
        n_valid=b,
        clip_param=float(clip_param),
        value_loss_coef=float(value_loss_coef),
        entropy_coef=float(entropy_coef),
        use_clipped_value_loss=use_clipped_value_loss,
    )
    vmem = pl.BlockSpec(memory_space=pltpu.MemorySpace.VMEM)
    smem = pl.BlockSpec(memory_space=pltpu.MemorySpace.SMEM)
    cost = pl.CostEstimate(
        flops=24 * b_pad,
        transcendentals=b_pad,                    # the exp
        bytes_accessed=6 * b_pad * 4 + _LANES * 4,
    )

    packed = pl.pallas_call(
        kernel,
        in_specs=[vmem, smem],
        out_specs=vmem,
        out_shape=jax.ShapeDtypeStruct((1, _LANES), jnp.float32),
        cost_estimate=cost,
    )(stacked, jnp.reshape(dist_entropy, (1,)).astype(jnp.float32))

    return packed[0, 0], packed[0, 1], packed[0, 2]


# ----------------------------------------------------------------------------
# Pure-JAX references (for correctness check only).
# ----------------------------------------------------------------------------
def _ref_advantages(returns, value_preds):
    adv = returns[:-1] - value_preds[:-1]
    return (adv - adv.mean()) / (adv.std(ddof=1) + EPS_PPO)


def _ref_losses(values, logp, old_logp, value_preds, returns, adv, entropy,
                clip_param, value_loss_coef, entropy_coef):
    ratio = jnp.exp(logp - old_logp)
    surr1 = ratio * adv
    surr2 = jnp.clip(ratio, 1.0 - clip_param, 1.0 + clip_param) * adv
    action_loss = -jnp.minimum(surr1, surr2).mean()
    vpc = value_preds + jnp.clip(values - value_preds, -clip_param, clip_param)
    vl = 0.5 * jnp.maximum((values - returns) ** 2, (vpc - returns) ** 2).mean()
    total = vl * value_loss_coef + action_loss - entropy * entropy_coef
    return action_loss, vl, total


if __name__ == "__main__":
    # Hyperparameters (as set in PPOGruBaseline.__init__).
    clip_param = 0.2
    value_loss_coef = 0.5
    entropy_coef = 0.01

    # Small deterministic rollout: T=8 steps, N=16 envs, minibatch B=64.
    T, N, B = 8, 16, 64
    key = jax.random.PRNGKey(0)
    k1, k2, k3, k4, k5, k6, k7, k8, k9 = jax.random.split(key, 9)

    returns = jax.random.normal(k1, (T + 1, N), jnp.float32)
    value_preds_roll = jax.random.normal(k2, (T + 1, N), jnp.float32)

    values = jax.random.normal(k3, (B, 1), jnp.float32)
    action_log_probs = -jnp.abs(jax.random.normal(k4, (B, 1), jnp.float32))
    old_action_log_probs = -jnp.abs(jax.random.normal(k5, (B, 1), jnp.float32))
    value_preds_batch = jax.random.normal(k6, (B, 1), jnp.float32)
    return_batch = jax.random.normal(k7, (B, 1), jnp.float32)
    adv_targ = jax.random.normal(k8, (B, 1), jnp.float32)
    # TODO(synk): dist_entropy / values / log-probs normally come from the
    # externally-injected actor_critic.evaluate_actions (GRU policy); here
    # they are synthesized as kernel inputs.
    dist_entropy = jnp.abs(jax.random.normal(k9, (), jnp.float32))

    # Kernel 1: advantage normalization.
    adv = get_advantages(returns, value_preds_roll)
    jax.block_until_ready(adv)
    adv_ref = _ref_advantages(returns, value_preds_roll)
    assert adv.shape == (T, N)
    assert jnp.allclose(adv, adv_ref, rtol=1e-5, atol=1e-5)

    # Kernel 1: non-normalized branch.
    adv_raw = get_advantages(returns, value_preds_roll,
                             use_normalized_advantage=False)
    jax.block_until_ready(adv_raw)
    assert jnp.allclose(adv_raw,
                        returns[:-1] - value_preds_roll[:-1],
                        rtol=1e-6, atol=1e-6)

    # Kernel 2: PPO surrogate + clipped value loss.
    a_loss, v_loss, t_loss = ppo_losses(
        values, action_log_probs, old_action_log_probs,
        value_preds_batch, return_batch, adv_targ, dist_entropy,
        clip_param=clip_param, value_loss_coef=value_loss_coef,
        entropy_coef=entropy_coef)
    jax.block_until_ready((a_loss, v_loss, t_loss))

    a_ref, v_ref, t_ref = _ref_losses(
        values, action_log_probs, old_action_log_probs,
        value_preds_batch, return_batch, adv_targ, dist_entropy,
        clip_param, value_loss_coef, entropy_coef)
    assert jnp.allclose(a_loss, a_ref, rtol=1e-5, atol=1e-5)
    assert jnp.allclose(v_loss, v_ref, rtol=1e-5, atol=1e-5)
    assert jnp.allclose(t_loss, t_ref, rtol=1e-5, atol=1e-5)

    print("KERNEL_OK")
</pallas_src>

<mosaic_0001>
module attributes {stable_mosaic.version = 11 : i64} {
  func.func @_advantage_kernel(%arg0: memref<2x128xf32, #tpu.memory_space<vmem>>, %arg1: memref<2x128xf32, #tpu.memory_space<vmem>>, %arg2: memref<2x128xf32, #tpu.memory_space<vmem>>) attributes {dimension_semantics = [], scalar_prefetch = 0 : i64, scratch_operands = 0 : i64, tpu.core_type = #tpu.core_type<tc>} {
    %c0 = arith.constant 0 : index
    %c0_0 = arith.constant 0 : index
    %0 = vector.load %arg0[%c0, %c0_0] : memref<2x128xf32, #tpu.memory_space<vmem>>, vector<2x128xf32>
    %c0_1 = arith.constant 0 : index
    %c0_2 = arith.constant 0 : index
    %1 = vector.load %arg1[%c0_1, %c0_2] : memref<2x128xf32, #tpu.memory_space<vmem>>, vector<2x128xf32>
    %2 = arith.subf %0, %1 : vector<2x128xf32>
    %3 = tpu.iota {dimensions = array<i32: 0>} : vector<2x128xi32>
    %4 = tpu.iota {dimensions = array<i32: 1>} : vector<2x128xi32>
    %c128_i32 = arith.constant 128 : i32
    %5 = vector.broadcast %c128_i32 : i32 to vector<2x128xi32>
    %6 = arith.muli %3, %5 : vector<2x128xi32>
    %7 = arith.addi %6, %4 : vector<2x128xi32>
    %c128_i32_3 = arith.constant 128 : i32
    %8 = vector.broadcast %c128_i32_3 : i32 to vector<2x128xi32>
    %9 = arith.cmpi slt, %7, %8 : vector<2x128xi32>
    %cst = arith.constant 0.000000e+00 : f32
    %10 = vector.broadcast %cst : f32 to vector<2x128xf32>
    %11 = arith.select %9, %2, %10 : vector<2x128xi1>, vector<2x128xf32>
    %12 = vector.shape_cast %11 : vector<2x128xf32> to vector<1x2x128xf32>
    %cst_4 = arith.constant dense<0.000000e+00> : vector<1xf32>
    %13 = vector.multi_reduction <add>, %12, %cst_4 [1, 2] : vector<1x2x128xf32> to vector<1xf32>
    %14 = vector.shape_cast %13 : vector<1xf32> to vector<1x1x1xf32>
    %15 = vector.extract %14[0, 0, 0] : f32 from vector<1x1x1xf32>
    %16 = arith.mulf %11, %11 : vector<2x128xf32>
    %17 = vector.shape_cast %16 : vector<2x128xf32> to vector<1x2x128xf32>
    %cst_5 = arith.constant dense<0.000000e+00> : vector<1xf32>
    %18 = vector.multi_reduction <add>, %17, %cst_5 [1, 2] : vector<1x2x128xf32> to vector<1xf32>
    %19 = vector.shape_cast %18 : vector<1xf32> to vector<1x1x1xf32>
    %20 = vector.extract %19[0, 0, 0] : f32 from vector<1x1x1xf32>
    %cst_6 = arith.constant 1.280000e+02 : f32
    %21 = arith.divf %15, %cst_6 : f32
    %22 = arith.mulf %15, %15 : f32
    %cst_7 = arith.constant 1.280000e+02 : f32
    %23 = arith.divf %22, %cst_7 : f32
    %24 = arith.subf %20, %23 : f32
    %cst_8 = arith.constant 1.270000e+02 : f32
    %25 = arith.divf %24, %cst_8 : f32
    %26 = math.sqrt %25 : f32
    %cst_9 = arith.constant 9.99999974E-6 : f32
    %27 = arith.addf %26, %cst_9 : f32
    %cst_10 = arith.constant 1.000000e+00 : f32
    %28 = arith.divf %cst_10, %27 : f32
    %29 = vector.broadcast %21 : f32 to vector<2x128xf32>
    %30 = arith.subf %2, %29 : vector<2x128xf32>
    %31 = vector.broadcast %28 : f32 to vector<2x128xf32>
    %32 = arith.mulf %30, %31 : vector<2x128xf32>
    %c0_11 = arith.constant 0 : index
    %c0_12 = arith.constant 0 : index
    %33 = vector.load %arg2[%c0_11, %c0_12] : memref<2x128xf32, #tpu.memory_space<vmem>>, vector<2x128xf32>
    tpu.vector_store %arg2[%c0_11, %c0_12], %32 {strides = array<i32>} : memref<2x128xf32, #tpu.memory_space<vmem>>, vector<2x128xf32>,
    return
  }
}

</mosaic_0001>

<llo_original>
// kernel: tpu_custom_call.1
$region0: #{tpu_custom_call.1}
  #allocation0 [shape = 'u32[]', space=smem, size = 0x4, offset = 0x4, fixed_abs, tag = 'smem constant byte address 0x4 - core index']
  #allocation1 [shape = 'u32[144,128]{1,0:T(1,128)}', space=vmem, size = 0x12000, scoped, tag = 'internal scratch']
  %s0 = inlined_call_operand.hbm [shape: f32[2,128], index: 0, kind: input, shape index: {}]
  %s1 = inlined_call_operand.hbm [shape: f32[2,128], index: 1, kind: input, shape index: {}]
  %s2 = inlined_call_operand.hbm [shape: f32[2,128], index: 2, kind: output, shape index: {}]
  %s3 = sld [smem:[#allocation0]]
  $region26: #{tpu_custom_call.1} parent=0
    _
  %s5 = ssub.s32 1, %s3
  %s6 = scalar_select 0, %s5, %s3
  $region1: #{tpu_custom_call.1} parent=0
    #allocation2 [shape = 'u8[1024]{0}', space=vmem, size = 0x400, scoped, tag = 'input window, operand 0, single buffered']
    #allocation3 [shape = 's32[1]{0}', space=sflag, size = 0x4, scoped, tag = 'scoped memory for tpu_custom_call.1']
    #allocation4 [shape = 's32[1]{0}', space=sflag, size = 0x4, scoped, tag = 'scoped memory for tpu_custom_call.1']
    #allocation5 [shape = 'u8[1024]{0}', space=vmem, size = 0x400, scoped, tag = 'input window, operand 1, single buffered']
    #allocation6 [shape = 's32[1]{0}', space=sflag, size = 0x4, scoped, tag = 'scoped memory for tpu_custom_call.1']
    #allocation7 [shape = 'u8[1024]{0}', space=vmem, size = 0x400, scoped, tag = 'output window, operand 0, single buffered']
    %7 = vsyncpa [#allocation3], 0
    %8 = vsyncpa [#allocation6], 0
    %9 = vsyncpa [#allocation4], 0
    // Predicated region
    $region2: #{tpu_custom_call.1} parent=1 // pred_check
      _
    $region3: #{tpu_custom_call.1} parent=1 // pred_check_branch
      %11 = sbr.rel (0) target = $region5
    $region4: #{tpu_custom_call.1} parent=1 // pred_region
      %s13 = ssub.s32 32, 32
      %14 = vsyncadd [#allocation3], %s13
      %s16 = sshll.u32 [#allocation2], 4
      %s17 = int_to_ptr.vmem [resolvable:$true] %s16
      %19 = dma.hbm_to_vmem [thread:$0]  %s0, 32, %s17, [#allocation3]
    $region5: #{tpu_custom_call.1} parent=1 // pred_fallthru
      _
    // Predicated region
    $region6: #{tpu_custom_call.1} parent=1 // pred_check
      _
    $region7: #{tpu_custom_call.1} parent=1 // pred_check_branch
      %21 = sbr.rel (0) target = $region9
    $region8: #{tpu_custom_call.1} parent=1 // pred_region
      %s23 = ssub.s32 32, 32
      %24 = vsyncadd [#allocation6], %s23
      %s26 = sshll.u32 [#allocation5], 4
      %s27 = int_to_ptr.vmem [resolvable:$true] %s26
      %29 = dma.hbm_to_vmem [thread:$0]  %s1, 32, %s27, [#allocation6]
    $region9: #{tpu_custom_call.1} parent=1 // pred_fallthru
      _
    // Predicated region
    $region10: #{tpu_custom_call.1} parent=1 // pred_check
      _
    $region11: #{tpu_custom_call.1} parent=1 // pred_check_branch
      %31 = sbr.rel (0) target = $region13
    $region12: #{tpu_custom_call.1} parent=1 // pred_region
      %32 = dma.done [#allocation3], 32
    $region13: #{tpu_custom_call.1} parent=1 // pred_fallthru
      _
    // Predicated region
    $region14: #{tpu_custom_call.1} parent=1 // pred_check
      _
    $region15: #{tpu_custom_call.1} parent=1 // pred_check_branch
      %34 = sbr.rel (0) target = $region17
    $region16: #{tpu_custom_call.1} parent=1 // pred_region
      %35 = dma.done [#allocation6], 32
    $region17: #{tpu_custom_call.1} parent=1 // pred_fallthru
      _
    %v36 = vld [vmem:[#allocation2] sm:$0x3]
    %v37 = vld [vmem:[#allocation5] sm:$0x3]
    %v38 = vsub.f32 %v36, %v37
    %v39 = vlaneseq
    %v40 = vshrl.u32 %v39, 7
    %v41 = vlaneseq
    %v42 = vand.u32 %v41, 127
    %v43 = vmul.u32 %v40, 128
    %v44 = vadd.s32 %v43, %v42
    %vm45 = vcmp.lt.s32.totalorder %v44, 128
    %v46 = vsel %vm45, %v38, 0.0
    %vm47 = vcmask 1041408
    %v48 = vsel %vm47, %v46, 0.0
    %49 = vadd.xlane.f32.xlu0 %v48
    %v50 = vpop.xlane.xlu0 %49
    %v51 = vrot.slane %v50, 4
    %v52 = vadd.f32 %v50, %v51
    %v53 = vrot.slane %v52, 2
    %v54 = vadd.f32 %v52, %v53
    %v55 = vrot.slane %v54, 1
    %v56 = vadd.f32 %v54, %v55
    %s57 = vtos %v56
    %v58 = vmul.f32 %v46, %v46
    %v59 = vsel %vm47, %v58, 0.0
    %60 = vadd.xlane.f32.xlu0 %v59
    %v61 = vpop.xlane.xlu0 %60
    %v62 = vrot.slane %v61, 4
    %v63 = vadd.f32 %v61, %v62
    %v64 = vrot.slane %v63, 2
    %v65 = vadd.f32 %v63, %v64
    %v66 = vrot.slane %v65, 1
    %v67 = vadd.f32 %v65, %v66
    %s68 = vtos %v67
    %v69 = vrcp.pop 128.0
    %s70 = vtos %v69
    %s71 = smul.f32 %s57, %s70
    %s72 = smul.f32 %s57, %s57
    %v73 = vrcp.pop 128.0
    %s74 = vtos %v73
    %s75 = smul.f32 %s72, %s74
    %s76 = ssub.f32 %s68, %s75
    %v77 = vrcp.pop 127.0
    %s78 = vtos %v77
    %s79 = smul.f32 %s76, %s78
    %v80 = vstv %s79
    %v81 = vrsqrt.pop %v80
    %v82 = vmul.f32 %v80, %v81
    %vm83 = vcmp.eq.f32.partialorder %v80, inf
    %v84 = vsel %vm83, %v80, %v82
    %vm85 = vcmp.eq.f32.partialorder %v80, 0.0
    %v86 = vand.u32 %v80, 2147483648
    %v87 = vsel %vm85, %v86, %v84
    %s88 = vtos %v87
    %s89 = sadd.f32 %s88, 1e-05
    %v90 = vstv %s89
    %v91 = vrcp.pop %v90
    %s92 = vtos %v91
    %v93 = vstv %s71
    %v94 = vsub.f32 %v38, %v93
    %v95 = vstv %s92
    %v96 = vmul.f32 %v94, %v95
    %97 = vst [vmem:[#allocation7] sm:$0x3] %v96
    // Predicated region
    $region18: #{tpu_custom_call.1} parent=1 // pred_check
      _
    $region19: #{tpu_custom_call.1} parent=1 // pred_check_branch
      %99 = sbr.rel (0) target = $region21
    $region20: #{tpu_custom_call.1} parent=1 // pred_region
      %s101 = ssub.s32 32, 32
      %102 = vsyncadd [#allocation4], %s101
      %s104 = sshll.u32 [#allocation7], 4
      %s105 = int_to_ptr.vmem [resolvable:$true] %s104
      %107 = dma.vmem_to_hbm [thread:$0]  %s105, 32, %s2, [#allocation4]
    $region21: #{tpu_custom_call.1} parent=1 // pred_fallthru
      _
    // Predicated region
    $region22: #{tpu_custom_call.1} parent=1 // pred_check
      _
    $region23: #{tpu_custom_call.1} parent=1 // pred_check_branch
      %109 = sbr.rel (0) target = $region25
    $region24: #{tpu_custom_call.1} parent=1 // pred_region
      %110 = dma.done [#allocation4], 32
    $region25: #{tpu_custom_call.1} parent=1 // pred_fallthru
      _
    %111 = vsyncpa [#allocation3], 1
    %112 = vsyncpa [#allocation6], 1
    %113 = vsyncpa [#allocation4], 1

</llo_original>
